<compile_context>
chip_gen: v7x
topology: tpu7x:2x2x1
jax: 0.10.0
libtpu: 0.0.40
codegen_flags: <defaults>
</compile_context>

<pallas_src>
import functools

import jax
import jax.numpy as jnp
from jax.experimental import pallas as pl
from jax.experimental.pallas import tpu as pltpu


def _round_up(v, a):
    return -(-v // a) * a


def _hw_params():
    """(max_tile_elems, max_rows, vmem_limit_bytes) tuned per TPU generation."""
    vmem_cap = 0
    try:
        vmem_cap = int(getattr(pltpu.get_tpu_info(), "vmem_capacity_bytes", 0) or 0)
    except Exception:
        vmem_cap = 0
    if vmem_cap >= 100 * 1024 * 1024:
        # v5e / v6e: 128 MiB VMEM per TensorCore -> allow ~8 MiB f32 input blocks.
        return 2 * 1024 * 1024, 4096, 80 * 1024 * 1024
    # v7x (64 MiB per TensorCore) or unknown: stay conservative (~4 MiB blocks).
    return 1024 * 1024, 2048, 48 * 1024 * 1024


def _pick_tile_n(n, c, align, max_tile_elems, max_rows):
    """Rows per tile: big enough to amortize the ~0.35us per-grid-step overhead,
    small enough that 2 inputs x 2 pipeline buffers + f32 temporaries fit VMEM."""
    tile = min(max_tile_elems // max(c, 1), max_rows)
    tile = min(tile, _round_up(n, align))          # never exceed the (aligned) batch
    if n > align:
        # Keep >=2 grid steps when possible so dimension_semantics=('parallel',)
        # can split the grid across both v7x TensorCores (no effect on v5e/v6e).
        tile = min(tile, _round_up(-(-n // 2), align))
    tile = max(align, (tile // align) * align)
    return tile


def _row_losses(pred_ref, tgt_ref):
    """Per-row loss (tile_n, 1) = sum_c( t * ((m + lse) - x) ), f32.

    log_softmax(x) = x - (m + lse), so -t*log_softmax(x) = t*((m + lse) - x).
    Single cross-lane reduction over the target tile; Mosaic masks physical lane
    padding in the axis=-1 reductions (block last dim == full class extent C).
    """
    x = pred_ref[...].astype(jnp.float32)
    t = tgt_ref[...].astype(jnp.float32)
    m = jnp.max(x, axis=-1, keepdims=True)                        # (tile_n, 1)
    lse = jnp.log(jnp.sum(jnp.exp(x - m), axis=-1, keepdims=True))
    return jnp.sum(t * ((m + lse) - x), axis=-1, keepdims=True)   # (tile_n, 1)


def _mask_rows(loss, tile_n, n_rows):
    """Zero per-row losses for rows >= n_rows (garbage rows of a partial last block;
    may be NaN/Inf, so use where rather than relying on t == 0)."""
    row0 = pl.program_id(0) * tile_n
    rows = row0 + jax.lax.broadcasted_iota(jnp.int32, loss.shape, 0)
    return jnp.where(rows < n_rows, loss, 0.0)


def _ce_partial_kernel(pred_ref, tgt_ref, out_ref, *, tile_n, n_rows, mask_rows):
    """One partial sum per grid step -> SMEM (1, 1) block. Grid axis is 'parallel'."""
    loss = _row_losses(pred_ref, tgt_ref)
    if mask_rows:
        loss = _mask_rows(loss, tile_n, n_rows)
    out_ref[0, 0] = jnp.sum(loss)


def _ce_rows_kernel(pred_ref, tgt_ref, out_ref, *, tile_n, n_rows, mask_rows):
    """Per-sample losses (reduction='none'). Out-of-range rows of the last partial
    block are masked (and dropped by the partial output writeback anyway)."""
    loss = _row_losses(pred_ref, tgt_ref)
    if mask_rows:
        loss = _mask_rows(loss, tile_n, n_rows)
    out_ref[...] = loss


def onehot_cross_entropy_loss(prediction, target, reduction="mean", tile_n=None):
    """prediction, target: (N, C) arrays. Returns scalar (mean/sum) or (N,) (none)."""
    N, C = prediction.shape
    assert target.shape == (N, C)

    itemsize = min(prediction.dtype.itemsize, target.dtype.itemsize)
    align = max(8, 32 // max(itemsize, 1))         # f32: 8, bf16: 16, int8/fp8: 32
    max_tile_elems, max_rows, vmem_limit = _hw_params()

    if tile_n is None:
        tile_n = _pick_tile_n(N, C, align, max_tile_elems, max_rows)
    else:
        tile_n = max(align, (int(tile_n) // align) * align)
        tile_n = min(tile_n, _round_up(N, align))

    num_tiles = pl.cdiv(N, tile_n)
    grid = (num_tiles,)
    mask_rows = (N % tile_n) != 0                  # last block is partial -> mask rows

    in_specs = [
        pl.BlockSpec((tile_n, C), lambda i: (i, 0)),
        pl.BlockSpec((tile_n, C), lambda i: (i, 0)),
    ]

    in_bytes = N * C * (prediction.dtype.itemsize + target.dtype.itemsize)
    flops = 6 * N * C
    transcendentals = N * C + N
    compiler_params = pltpu.CompilerParams(
        dimension_semantics=("parallel",),
        vmem_limit_bytes=vmem_limit,
    )

    if reduction in ("mean", "sum"):
        kernel = functools.partial(
            _ce_partial_kernel, tile_n=tile_n, n_rows=N, mask_rows=mask_rows
        )
        partials = pl.pallas_call(
            kernel,
            out_shape=jax.ShapeDtypeStruct((num_tiles, 1), jnp.float32),
            grid_spec=pltpu.PrefetchScalarGridSpec(
                num_scalar_prefetch=0,
                grid=grid,
                in_specs=in_specs,
                out_specs=pl.BlockSpec(
                    (1, 1), lambda i: (i, 0), memory_space=pltpu.SMEM
                ),
            ),
            compiler_params=compiler_params,
            cost_estimate=pl.CostEstimate(
                flops=flops,
                transcendentals=transcendentals,
                bytes_accessed=in_bytes + num_tiles * 4,
            ),
        )(prediction, target)
        total = jnp.sum(partials)
        if reduction == "mean":
            return total / jnp.float32(N)
        return total
    else:  # 'none'
        kernel = functools.partial(
            _ce_rows_kernel, tile_n=tile_n, n_rows=N, mask_rows=mask_rows
        )
        out = pl.pallas_call(
            kernel,
            out_shape=jax.ShapeDtypeStruct((N, 1), jnp.float32),
            grid_spec=pltpu.PrefetchScalarGridSpec(
                num_scalar_prefetch=0,
                grid=grid,
                in_specs=in_specs,
                out_specs=pl.BlockSpec((tile_n, 1), lambda i: (i, 0)),
            ),
            compiler_params=compiler_params,
            cost_estimate=pl.CostEstimate(
                flops=flops,
                transcendentals=transcendentals,
                bytes_accessed=in_bytes + N * 4,
            ),
        )(prediction, target)
        return out[:, 0]


def _reference(prediction, target, reduction="mean"):
    x = prediction.astype(jnp.float32)
    lsm = jax.nn.log_softmax(x, axis=1)
    per_row = jnp.sum(-target.astype(jnp.float32) * lsm, axis=1)
    if reduction == "mean":
        return jnp.mean(per_row)
    elif reduction == "sum":
        return jnp.sum(per_row)
    return per_row


if __name__ == "__main__":
    key = jax.random.PRNGKey(0)
    k1, k2, k3, k4, k5 = jax.random.split(key, 5)

    ok = True

    def check(pred, tgt, reduction, tile_n=None, tag=""):
        global ok
        out = onehot_cross_entropy_loss(pred, tgt, reduction=reduction, tile_n=tile_n)
        out = jax.block_until_ready(out)
        ref = _reference(pred, tgt, reduction=reduction)
        if not jnp.allclose(out, ref, rtol=1e-5, atol=1e-5):
            ok = False
            print(f"MISMATCH {tag} reduction={reduction}: {out} vs {ref}")

    # Case 1: small one-hot targets, C=32 (not lane-aligned -> checks that Mosaic's
    # padded-lane masking makes the explicit lane mask unnecessary).
    N1, C1 = 8, 32
    pred1 = jax.random.normal(k1, (N1, C1), dtype=jnp.float32)
    labels1 = jax.random.randint(k2, (N1,), 0, C1)
    tgt1 = jax.nn.one_hot(labels1, C1, dtype=jnp.float32)
    for reduction in ("mean", "sum", "none"):
        check(pred1, tgt1, reduction, tag="onehot-small")

    # Case 2: soft targets, lane-aligned C, multi-tile grid (parallel partial sums).
    N2, C2 = 64, 128
    pred2 = jax.random.normal(k3, (N2, C2), dtype=jnp.float32)
    tgt2 = jax.nn.softmax(jax.random.normal(k4, (N2, C2), dtype=jnp.float32), axis=1)
    for reduction in ("mean", "sum", "none"):
        check(pred2, tgt2, reduction, tile_n=16, tag="soft-tiled")

    # Case 3: batch not a multiple of the tile -> exercises the partial last block
    # plus in-kernel row masking (no host-side padding copy anymore).
    N3, C3 = 10, 40
    pred3 = jax.random.normal(k5, (N3, C3), dtype=jnp.float32)
    labels3 = jax.random.randint(k2, (N3,), 0, C3)
    tgt3 = jax.nn.one_hot(labels3, C3, dtype=jnp.float32)
    for reduction in ("mean", "sum", "none"):
        check(pred3, tgt3, reduction, tile_n=8, tag="partial-block")

    if ok:
        print("KERNEL_OK")
</pallas_src>

<mosaic_0001>
module attributes {stable_mosaic.version = 11 : i64} {
  func.func @_ce_partial_kernel(%arg0: i32, %arg1: memref<8x32xf32, #tpu.memory_space<vmem>>, %arg2: memref<8x32xf32, #tpu.memory_space<vmem>>, %arg3: memref<1x1xf32, #tpu.memory_space<smem>>) attributes {dimension_semantics = [#tpu.dimension_semantics<parallel>], iteration_bounds = array<i64: 1>, scalar_prefetch = 0 : i64, scratch_operands = 0 : i64, tpu.core_type = #tpu.core_type<tc>, window_params = [{transform_indices = @transform_0, window_bounds = array<i64: 8, 32>}, {transform_indices = @transform_1, window_bounds = array<i64: 8, 32>}, {transform_indices = @transform_2, window_bounds = array<i64: 1, 1>}]} {
    %c0 = arith.constant 0 : index
    %c0_0 = arith.constant 0 : index
    %0 = vector.load %arg1[%c0, %c0_0] : memref<8x32xf32, #tpu.memory_space<vmem>>, vector<8x32xf32>
    %c0_1 = arith.constant 0 : index
    %c0_2 = arith.constant 0 : index
    %1 = vector.load %arg2[%c0_1, %c0_2] : memref<8x32xf32, #tpu.memory_space<vmem>>, vector<8x32xf32>
    %cst = arith.constant dense<0xFF800000> : vector<8xf32>
    %2 = vector.multi_reduction <maximumf>, %0, %cst [1] : vector<8x32xf32> to vector<8xf32>
    %3 = vector.shape_cast %2 : vector<8xf32> to vector<8x1xf32>
    %4 = vector.broadcast %3 : vector<8x1xf32> to vector<8x32xf32>
    %5 = arith.subf %0, %4 : vector<8x32xf32>
    %6 = math.exp %5 : vector<8x32xf32>
    %cst_3 = arith.constant dense<0.000000e+00> : vector<8xf32>
    %7 = vector.multi_reduction <add>, %6, %cst_3 [1] : vector<8x32xf32> to vector<8xf32>
    %8 = vector.shape_cast %7 : vector<8xf32> to vector<8x1xf32>
    %9 = math.log %8 : vector<8x1xf32>
    %10 = arith.addf %3, %9 : vector<8x1xf32>
    %11 = vector.broadcast %10 : vector<8x1xf32> to vector<8x32xf32>
    %12 = arith.subf %11, %0 : vector<8x32xf32>
    %13 = arith.mulf %1, %12 : vector<8x32xf32>
    %cst_4 = arith.constant dense<0.000000e+00> : vector<8xf32>
    %14 = vector.multi_reduction <add>, %13, %cst_4 [1] : vector<8x32xf32> to vector<8xf32>
    %15 = vector.shape_cast %14 : vector<8xf32> to vector<8x1xf32>
    %16 = vector.shape_cast %15 : vector<8x1xf32> to vector<1x8x1xf32>
    %cst_5 = arith.constant dense<0.000000e+00> : vector<1xf32>
    %17 = vector.multi_reduction <add>, %16, %cst_5 [1, 2] : vector<1x8x1xf32> to vector<1xf32>
    %18 = vector.shape_cast %17 : vector<1xf32> to vector<1x1x1xf32>
    %19 = vector.extract %18[0, 0, 0] : f32 from vector<1x1x1xf32>
    %c0_6 = arith.constant 0 : index
    %c0_7 = arith.constant 0 : index
    %20 = memref.load %arg3[%c0_6, %c0_7] : memref<1x1xf32, #tpu.memory_space<smem>>
    memref.store %19, %arg3[%c0_6, %c0_7] : memref<1x1xf32, #tpu.memory_space<smem>>
    return
  }
  func.func @transform_0(%arg0: i32) -> (i32, i32) {
    %c0_i32 = arith.constant 0 : i32
    %c0_i32_0 = arith.constant 0 : i32
    return %arg0, %c0_i32 : i32, i32
  }
  func.func @transform_1(%arg0: i32) -> (i32, i32) {
    %c0_i32 = arith.constant 0 : i32
    %c0_i32_0 = arith.constant 0 : i32
    return %arg0, %c0_i32 : i32, i32
  }
  func.func @transform_2(%arg0: i32) -> (i32, i32) {
    %c0_i32 = arith.constant 0 : i32
    %c0_i32_0 = arith.constant 0 : i32
    return %arg0, %c0_i32 : i32, i32
  }
}

</mosaic_0001>

<llo_original>
// kernel: tpu_custom_call.1
$region0: #{tpu_custom_call.1}
  #allocation0 [shape = 'u32[]', space=smem, size = 0x4, offset = 0x4, fixed_abs, tag = 'smem constant byte address 0x4 - core index']
  #allocation1 [shape = 'u32[144,128]{1,0:T(1,128)}', space=vmem, size = 0x12000, scoped, tag = 'internal scratch']
  %s0 = inlined_call_operand.hbm [shape: f32[8,32], index: 0, kind: input, shape index: {}]
  %s1 = inlined_call_operand.hbm [shape: f32[8,32], index: 1, kind: input, shape index: {}]
  %s2 = inlined_call_operand.hbm [shape: f32[1,1], index: 2, kind: output, shape index: {}]
  %s3 = sld [smem:[#allocation0]]
  $region26: #{tpu_custom_call.1} parent=0
    _
  %s5 = ssub.s32 1, %s3
  %s6 = scalar_select 0, %s5, %s3
  $region1: #{tpu_custom_call.1} parent=0
    #allocation2 [shape = 'u8[4096]{0}', space=vmem, size = 0x1000, scoped, tag = 'input window, operand 0, single buffered']
    #allocation3 [shape = 's32[1]{0}', space=sflag, size = 0x4, scoped, tag = 'scoped memory for tpu_custom_call.1']
    #allocation4 [shape = 's32[1]{0}', space=sflag, size = 0x4, scoped, tag = 'scoped memory for tpu_custom_call.1']
    #allocation5 [shape = 'u8[4096]{0}', space=vmem, size = 0x1000, scoped, tag = 'input window, operand 1, single buffered']
    #allocation6 [shape = 's32[1]{0}', space=sflag, size = 0x4, scoped, tag = 'scoped memory for tpu_custom_call.1']
    #allocation7 [shape = 'u8[512]{0}', space=smem, size = 0x200, scoped, tag = 'output window, operand 0, single buffered']
    %7 = vsyncpa [#allocation3], 0
    %8 = vsyncpa [#allocation6], 0
    %9 = vsyncpa [#allocation4], 0
    // Predicated region
    $region2: #{tpu_custom_call.1} parent=1 // pred_check
      _
    $region3: #{tpu_custom_call.1} parent=1 // pred_check_branch
      %11 = sbr.rel (0) target = $region5
    $region4: #{tpu_custom_call.1} parent=1 // pred_region
      %s13 = ssub.s32 128, 128
      %14 = vsyncadd [#allocation3], %s13
      %s16 = sshll.u32 [#allocation2], 4
      %s17 = int_to_ptr.vmem [resolvable:$true] %s16
      %19 = dma.hbm_to_vmem [thread:$0]  %s0, 128, %s17, [#allocation3]
    $region5: #{tpu_custom_call.1} parent=1 // pred_fallthru
      _
    // Predicated region
    $region6: #{tpu_custom_call.1} parent=1 // pred_check
      _
    $region7: #{tpu_custom_call.1} parent=1 // pred_check_branch
      %21 = sbr.rel (0) target = $region9
    $region8: #{tpu_custom_call.1} parent=1 // pred_region
      %s23 = ssub.s32 128, 128
      %24 = vsyncadd [#allocation6], %s23
      %s26 = sshll.u32 [#allocation5], 4
      %s27 = int_to_ptr.vmem [resolvable:$true] %s26
      %29 = dma.hbm_to_vmem [thread:$0]  %s1, 128, %s27, [#allocation6]
    $region9: #{tpu_custom_call.1} parent=1 // pred_fallthru
      _
    // Predicated region
    $region10: #{tpu_custom_call.1} parent=1 // pred_check
      _
    $region11: #{tpu_custom_call.1} parent=1 // pred_check_branch
      %31 = sbr.rel (0) target = $region13
    $region12: #{tpu_custom_call.1} parent=1 // pred_region
      %32 = dma.done [#allocation3], 128
    $region13: #{tpu_custom_call.1} parent=1 // pred_fallthru
      _
    // Predicated region
    $region14: #{tpu_custom_call.1} parent=1 // pred_check
      _
    $region15: #{tpu_custom_call.1} parent=1 // pred_check_branch
      %34 = sbr.rel (0) target = $region17
    $region16: #{tpu_custom_call.1} parent=1 // pred_region
      %35 = dma.done [#allocation6], 128
    $region17: #{tpu_custom_call.1} parent=1 // pred_fallthru
      _
    %v36 = vld [vmem:[#allocation2] sm:$0xff]
    %v37 = vld [vmem:[#allocation5] sm:$0xff]
    %vm38 = vcmask 261120
    %v39 = vsel %vm38, %v36, -inf
    %40 = vmax.xlane.f32.xlu0 %v39
    %v41 = vpop.xlane.xlu0 %40
    %v42 = vsub.f32 %v36, %v41
    %v43 = vmul.f32 %v42, 1.442695
    %v44 = vpow.pop %v43
    %v45 = vsel %vm38, %v44, 0.0
    %46 = vadd.xlane.f32.xlu0 %v45
    %v47 = vpop.xlane.xlu0 %46
    %v48 = vlog2.pop %v47
    %v49 = vmul.f32 %v48, 0.6931472
    %v50 = vadd.f32 %v41, %v49
    %v51 = vsub.f32 %v50, %v36
    %v52 = vmul.f32 %v37, %v51
    %v53 = vsel %vm38, %v52, 0.0
    %54 = vadd.xlane.f32.xlu0 %v53
    %v55 = vpop.xlane.xlu0 %54
    %vm56 = vcmask 7168
    %v57 = vsel %vm56, %v55, 0.0
    %58 = vadd.xlane.f32.xlu0 %v57
    %v59 = vpop.xlane.xlu0 %58
    %v60 = vrot.slane %v59, 4
    %v61 = vadd.f32 %v59, %v60
    %v62 = vrot.slane %v61, 2
    %v63 = vadd.f32 %v61, %v62
    %v64 = vrot.slane %v63, 1
    %v65 = vadd.f32 %v63, %v64
    %s66 = vtos %v65
    %s67 = scalar_lea.smem [#allocation7], 0
    %68 = sst [smem:[%s67]] %s66
    // Predicated region
    $region18: #{tpu_custom_call.1} parent=1 // pred_check
      _
    $region19: #{tpu_custom_call.1} parent=1 // pred_check_branch
      %70 = sbr.rel (0) target = $region21
    $region20: #{tpu_custom_call.1} parent=1 // pred_region
      %s72 = ssub.s32 16, 16
      %73 = vsyncadd [#allocation4], %s72
      %76 = dma.smem_to_hbm [#allocation7], 16, %s2, [#allocation4]
    $region21: #{tpu_custom_call.1} parent=1 // pred_fallthru
      _
    // Predicated region
    $region22: #{tpu_custom_call.1} parent=1 // pred_check
      _
    $region23: #{tpu_custom_call.1} parent=1 // pred_check_branch
      %78 = sbr.rel (0) target = $region25
    $region24: #{tpu_custom_call.1} parent=1 // pred_region
      %79 = dma.done [#allocation4], 16
    $region25: #{tpu_custom_call.1} parent=1 // pred_fallthru
      _
    %80 = sfence
    %81 = vsyncpa [#allocation3], 1
    %82 = vsyncpa [#allocation6], 1
    %83 = vsyncpa [#allocation4], 1

</llo_original>
